<compile_context>
chip_gen: v7x
topology: tpu7x:2x2x1
jax: 0.10.0
libtpu: 0.0.40
codegen_flags: <defaults>
</compile_context>

<pallas_src>
import functools

import jax
import jax.numpy as jnp
from jax.experimental import pallas as pl
from jax.experimental.pallas import tpu as pltpu


# ---------------------------------------------------------------------------
# helpers
# ---------------------------------------------------------------------------
def _round_up(x, m):
    return ((x + m - 1) // m) * m


def _vmem_budget_bytes():
    """~75% of physical VMEM (48 MiB on v7x, 96 MiB on v5e/v6e); safe default
    of 48 MiB if the query is unavailable (e.g. interpret mode / CPU AOT)."""
    try:
        info = pltpu.get_tpu_info()
        cap = getattr(info, "vmem_capacity_bytes", None)
        if cap:
            return int(cap * 3 // 4)
    except Exception:
        pass
    return 48 * 1024 * 1024


def _largest_divisor_tile(total, cap, quantum):
    """Largest multiple of `quantum` that divides `total` and is <= cap.
    `total` is always a multiple of `quantum`, so `quantum` is a valid
    fallback and the chosen tile always divides the padded extent."""
    best = quantum
    t = quantum
    while t <= min(cap, total):
        if total % t == 0:
            best = t
        t += quantum
    return best


# ---------------------------------------------------------------------------
# kernels
# ---------------------------------------------------------------------------
def _linear_kernel_single_k(x_ref, w_ref, b_ref, o_ref):
    # Whole K contraction in one MXU pass: no scratch accumulator needed.
    # x_ref: (tm, tk), w_ref: (tk, tn), b_ref: (1, tn), o_ref: (tm, tn)
    acc = jnp.dot(x_ref[...], w_ref[...], preferred_element_type=jnp.float32)
    o_ref[...] = (acc + b_ref[...]).astype(o_ref.dtype)


def _linear_kernel_multi_k(x_ref, w_ref, b_ref, o_ref, acc_ref):
    # K is tiled: f32 VMEM accumulator, init at k==0, finalize at k==last.
    k = pl.program_id(2)

    @pl.when(k == 0)
    def _():
        acc_ref[...] = jnp.zeros_like(acc_ref)

    acc_ref[...] += jnp.dot(
        x_ref[...], w_ref[...], preferred_element_type=jnp.float32
    )

    @pl.when(k == pl.num_programs(2) - 1)
    def _():
        o_ref[...] = (acc_ref[...] + b_ref[...]).astype(o_ref.dtype)


# ---------------------------------------------------------------------------
# params (init-time, ONCE) and forward
# ---------------------------------------------------------------------------
def prepare_encoder_params(W, b, compute_dtype=jnp.float32):
    """One-time layout prep for W:(N_o,N_i), b:(N_o,):
      - transpose W to (N_i, N_o) so the kernel contracts with a plain dot,
      - zero-pad K/N up to the 128-lane quantum only,
      - optionally cast W to bf16 for the MXU (f32 accumulation kept).
    Do NOT call this per forward step."""
    N_o, N_i = W.shape
    Kp = _round_up(max(N_i, 1), 128)
    Np = _round_up(max(N_o, 1), 128)
    Wt = jnp.pad(W.T, ((0, Kp - N_i), (0, Np - N_o))).astype(compute_dtype)
    bp = jnp.pad(b, (0, Np - N_o)).reshape(1, Np).astype(jnp.float32)
    return {"Wt": Wt, "b": bp, "N_i": N_i, "N_o": N_o, "Kp": Kp, "Np": Np}


@functools.partial(jax.jit, static_argnames=("out_dtype",))
def _forward_impl(x, Wt, bp, out_dtype):
    B, N_i = x.shape
    Kp, Np = Wt.shape
    vmem_budget = _vmem_budget_bytes()

    # Tile selection: lane-dense, (8,128)-legal, divisors of the padded
    # extents (Kp, Np are multiples of 128 by construction).  Larger K tiles
    # on 128-MiB-VMEM generations (v5e/v6e); v7x stays at tk<=1024 so the
    # double-buffered footprint remains well under its 64 MiB.
    tk_cap = 2048 if vmem_budget >= 96 * 1024 * 1024 else 1024
    tm = min(512, _round_up(max(B, 1), 8))
    tn = _largest_divisor_tile(Np, 512, 128)
    tk = _largest_divisor_tile(Kp, tk_cap, 128)

    Mp = _round_up(B, tm)
    xp = x.astype(Wt.dtype)
    if Mp != B or Kp != N_i:
        xp = jnp.pad(xp, ((0, Mp - B), (0, Kp - N_i)))

    grid = (Mp // tm, Np // tn, Kp // tk)
    grid_m, grid_n, grid_k = grid

    itm = jnp.dtype(Wt.dtype).itemsize
    cost = pl.CostEstimate(
        flops=2 * Mp * Kp * Np,
        transcendentals=0,
        bytes_accessed=(
            Mp * Kp * itm * grid_n          # x re-read once per N tile
            + Kp * Np * itm * grid_m        # W re-read once per M tile
            + Np * 4 * grid_m               # bias
            + Mp * Np * jnp.dtype(out_dtype).itemsize
        ),
    )

    in_specs = [
        pl.BlockSpec((tm, tk), lambda i, j, k: (i, k)),   # x tile
        pl.BlockSpec((tk, tn), lambda i, j, k: (k, j)),   # W tile (K-major)
        pl.BlockSpec((1, tn), lambda i, j, k: (0, j)),    # bias tile
    ]
    out_spec = pl.BlockSpec((tm, tn), lambda i, j, k: (i, j))

    if grid_k == 1:
        kernel = _linear_kernel_single_k
        scratch = []
    else:
        kernel = _linear_kernel_multi_k
        scratch = [pltpu.VMEM((tm, tn), jnp.float32)]

    yp = pl.pallas_call(
        kernel,
        out_shape=jax.ShapeDtypeStruct((Mp, Np), out_dtype),
        grid_spec=pltpu.PrefetchScalarGridSpec(
            num_scalar_prefetch=0,
            grid=grid,
            in_specs=in_specs,
            out_specs=out_spec,
            scratch_shapes=scratch,
        ),
        compiler_params=pltpu.CompilerParams(
            dimension_semantics=("parallel", "parallel", "arbitrary"),
            vmem_limit_bytes=vmem_budget,
        ),
        cost_estimate=cost,
    )(xp, Wt, bp)

    return yp


def shared_encoder_forward(x, params):
    """y = x @ W.T + b  (torch nn.Linear semantics).  `params` comes from
    prepare_encoder_params (padded / transposed once at init)."""
    B = x.shape[0]
    N_o = params["N_o"]
    yp = _forward_impl(x, params["Wt"], params["b"], out_dtype=x.dtype)
    if yp.shape == (B, N_o):
        return yp
    return yp[:B, :N_o]


# ---------------------------------------------------------------------------
# demo / correctness check
# ---------------------------------------------------------------------------
if __name__ == "__main__":
    # Module ctor args: N (unused by forward), N_i, N_o
    N, N_i, N_o = 4, 32, 32
    B = 8  # batch of input vectors

    key = jax.random.PRNGKey(0)
    kx, kw, kb = jax.random.split(key, 3)

    # torch nn.Linear-style init: U(-1/sqrt(N_i), 1/sqrt(N_i))
    bound = 1.0 / (N_i ** 0.5)
    W = jax.random.uniform(kw, (N_o, N_i), jnp.float32, -bound, bound)
    b = jax.random.uniform(kb, (N_o,), jnp.float32, -bound, bound)
    x = jax.random.normal(kx, (B, N_i), jnp.float32)

    # init-time, once (use compute_dtype=jnp.bfloat16 for the fast MXU path
    # when model tolerance allows; f32 here to match nn.Linear numerics).
    params = prepare_encoder_params(W, b, compute_dtype=jnp.float32)

    y = shared_encoder_forward(x, params)  # forward pass
    jax.block_until_ready(y)

    # Correctness check against plain-JAX nn.Linear reference
    y_ref = x @ W.T + b
    assert y.shape == (B, N_o)
    assert jnp.allclose(y, y_ref, atol=1e-5, rtol=1e-5)

    print("KERNEL_OK")
</pallas_src>

<mosaic_0001>
module attributes {stable_mosaic.version = 11 : i64} {
  func.func @_linear_kernel_single_k(%arg0: i32, %arg1: i32, %arg2: i32, %arg3: memref<8x128xf32, #tpu.memory_space<vmem>>, %arg4: memref<128x128xf32, #tpu.memory_space<vmem>>, %arg5: memref<1x128xf32, #tpu.memory_space<vmem>>, %arg6: memref<8x128xf32, #tpu.memory_space<vmem>>) attributes {dimension_semantics = [#tpu.dimension_semantics<parallel>, #tpu.dimension_semantics<parallel>, #tpu.dimension_semantics<arbitrary>], iteration_bounds = array<i64: 1, 1, 1>, scalar_prefetch = 0 : i64, scratch_operands = 0 : i64, tpu.core_type = #tpu.core_type<tc>, window_params = [{transform_indices = @transform_0, window_bounds = array<i64: 8, 128>}, {transform_indices = @transform_1, window_bounds = array<i64: 128, 128>}, {transform_indices = @transform_2, window_bounds = array<i64: 1, 128>}, {transform_indices = @transform_3, window_bounds = array<i64: 8, 128>}]} {
    %c0 = arith.constant 0 : index
    %c0_0 = arith.constant 0 : index
    %0 = vector.load %arg3[%c0, %c0_0] : memref<8x128xf32, #tpu.memory_space<vmem>>, vector<8x128xf32>
    %c0_1 = arith.constant 0 : index
    %c0_2 = arith.constant 0 : index
    %1 = vector.load %arg4[%c0_1, %c0_2] : memref<128x128xf32, #tpu.memory_space<vmem>>, vector<128x128xf32>
    %cst = arith.constant dense<0.000000e+00> : vector<8x128xf32>
    %2 = tpu.matmul %0, %1, %cst {dimension_numbers = #tpu.dot_dimension_numbers<[1], [0], [0], [1], [0, 0, 1, 1], [], []>} : vector<8x128xf32>, vector<128x128xf32>, vector<8x128xf32> -> vector<8x128xf32>
    %c0_3 = arith.constant 0 : index
    %c0_4 = arith.constant 0 : index
    %3 = vector.load %arg5[%c0_3, %c0_4] : memref<1x128xf32, #tpu.memory_space<vmem>>, vector<1x128xf32>
    %4 = vector.broadcast %3 : vector<1x128xf32> to vector<8x128xf32>
    %5 = arith.addf %2, %4 : vector<8x128xf32>
    %c0_5 = arith.constant 0 : index
    %c0_6 = arith.constant 0 : index
    %6 = vector.load %arg6[%c0_5, %c0_6] : memref<8x128xf32, #tpu.memory_space<vmem>>, vector<8x128xf32>
    tpu.vector_store %arg6[%c0_5, %c0_6], %5 {strides = array<i32>} : memref<8x128xf32, #tpu.memory_space<vmem>>, vector<8x128xf32>,
    return
  }
  func.func @transform_0(%arg0: i32, %arg1: i32, %arg2: i32) -> (i32, i32) {
    %c0_i32 = arith.constant 0 : i32
    return %arg0, %arg2 : i32, i32
  }
  func.func @transform_1(%arg0: i32, %arg1: i32, %arg2: i32) -> (i32, i32) {
    %c0_i32 = arith.constant 0 : i32
    return %arg2, %arg1 : i32, i32
  }
  func.func @transform_2(%arg0: i32, %arg1: i32, %arg2: i32) -> (i32, i32) {
    %c0_i32 = arith.constant 0 : i32
    %c0_i32_0 = arith.constant 0 : i32
    return %c0_i32, %arg1 : i32, i32
  }
  func.func @transform_3(%arg0: i32, %arg1: i32, %arg2: i32) -> (i32, i32) {
    %c0_i32 = arith.constant 0 : i32
    return %arg0, %arg1 : i32, i32
  }
}

</mosaic_0001>

<llo_original>
// kernel: _forward_impl.1
$region0: #{_forward_impl.1}
  #allocation0 [shape = 'u32[]', space=smem, size = 0x4, offset = 0x4, fixed_abs, tag = 'smem constant byte address 0x4 - core index']
  #allocation1 [shape = 'u32[144,128]{1,0:T(1,128)}', space=vmem, size = 0x12000, scoped, tag = 'internal scratch']
  %s0 = inlined_call_operand.vmem [shape: f32[8,128], index: 0, kind: input, shape index: {}]
  %s1 = inlined_call_operand.hbm [shape: f32[128,128], index: 1, kind: input, shape index: {}]
  %s2 = inlined_call_operand.vmem [shape: f32[1,128], index: 2, kind: input, shape index: {}]
  %s3 = inlined_call_operand.hbm [shape: f32[8,128], index: 3, kind: output, shape index: {}]
  %s4 = sld [smem:[#allocation0]]
  $region26: #{_forward_impl.1} parent=0
    _
  %s6 = ssub.s32 1, %s4
  %s7 = scalar_select 0, %s6, %s4
  $region1: #{_forward_impl.1} parent=0
    #allocation2 [shape = 'u8[65536]{0}', space=vmem, size = 0x10000, scoped, tag = 'input window, operand 1, single buffered']
    #allocation3 [shape = 's32[1]{0}', space=sflag, size = 0x4, scoped, tag = 'scoped memory for _forward_impl.1']
    #allocation4 [shape = 's32[1]{0}', space=sflag, size = 0x4, scoped, tag = 'scoped memory for _forward_impl.1']
    #allocation5 [shape = 'u8[4096]{0}', space=vmem, size = 0x1000, scoped, tag = 'output window, operand 0, single buffered']
    %8 = vsyncpa [#allocation3], 0
    %9 = vsyncpa [#allocation4], 0
    // Predicated region
    $region2: #{_forward_impl.1} parent=1 // pred_check
      _
    $region3: #{_forward_impl.1} parent=1 // pred_check_branch
      %11 = sbr.rel (0) target = $region5
    $region4: #{_forward_impl.1} parent=1 // pred_region
      _
    $region5: #{_forward_impl.1} parent=1 // pred_fallthru
      _
    // Predicated region
    $region6: #{_forward_impl.1} parent=1 // pred_check
      _
    $region7: #{_forward_impl.1} parent=1 // pred_check_branch
      %13 = sbr.rel (0) target = $region9
    $region8: #{_forward_impl.1} parent=1 // pred_region
      %s15 = ssub.s32 2048, 2048
      %16 = vsyncadd [#allocation3], %s15
      %s17 = sshll.u32 [#allocation2], 4
      %s18 = int_to_ptr.vmem [resolvable:$true] %s17
      %23 = dma.hbm_to_vmem [thread:$0]  %s1, 2048, %s18, [#allocation3], 128, 128, 8
    $region9: #{_forward_impl.1} parent=1 // pred_fallthru
      _
    // Predicated region
    $region10: #{_forward_impl.1} parent=1 // pred_check
      _
    $region11: #{_forward_impl.1} parent=1 // pred_check_branch
      %25 = sbr.rel (0) target = $region13
    $region12: #{_forward_impl.1} parent=1 // pred_region
      _
    $region13: #{_forward_impl.1} parent=1 // pred_fallthru
      _
    // Predicated region
    $region14: #{_forward_impl.1} parent=1 // pred_check
      _
    $region15: #{_forward_impl.1} parent=1 // pred_check_branch
      %27 = sbr.rel (0) target = $region17
    $region16: #{_forward_impl.1} parent=1 // pred_region
      %28 = dma.done [#allocation3], 2048
    $region17: #{_forward_impl.1} parent=1 // pred_fallthru
      _
    %v29 = vld [vmem:[%s0] sm:$0xff]
    %v30 = vld [vmem:[#allocation2] sm:$0xff]
    %v31 = vld [vmem:[#allocation2 + $0x8] sm:$0xff]
    %v32 = vld [vmem:[#allocation2 + $0x10] sm:$0xff]
    %v33 = vld [vmem:[#allocation2 + $0x18] sm:$0xff]
    %v34 = vld [vmem:[#allocation2 + $0x20] sm:$0xff]
    %v35 = vld [vmem:[#allocation2 + $0x28] sm:$0xff]
    %v36 = vld [vmem:[#allocation2 + $0x30] sm:$0xff]
    %v37 = vld [vmem:[#allocation2 + $0x38] sm:$0xff]
    %v38 = vld [vmem:[#allocation2 + $0x40] sm:$0xff]
    %v39 = vld [vmem:[#allocation2 + $0x48] sm:$0xff]
    %v40 = vld [vmem:[#allocation2 + $0x50] sm:$0xff]
    %v41 = vld [vmem:[#allocation2 + $0x58] sm:$0xff]
    %v42 = vld [vmem:[#allocation2 + $0x60] sm:$0xff]
    %v43 = vld [vmem:[#allocation2 + $0x68] sm:$0xff]
    %v44 = vld [vmem:[#allocation2 + $0x70] sm:$0xff]
    %v45 = vld [vmem:[#allocation2 + $0x78] sm:$0xff]
    %v46 = vld [vmem:[%s2] sm:$0x1]
    %v48 = vlaneseq
    %v49 = vshrl.u32 %v48, 7
    %v50 = vsub.s32 0, %v49
    %v51 = vrot.slane %v46, %v50
    %53 = vmatprep.subr.mxu0 0.0
    %54 = vmatpush1.msra.mxu0 %v30
    %55 = vmatprep.subr.mxu0 0.0
    %56 = vmatpush1.msra.mxu0 %v31
    %57 = vmatprep.subr.mxu0 0.0
    %58 = vmatpush1.msra.mxu0 %v32
    %59 = vmatprep.subr.mxu0 0.0
    %60 = vmatpush1.msra.mxu0 %v33
    %61 = vmatprep.subr.mxu0 0.0
    %62 = vmatpush1.msra.mxu0 %v34
    %63 = vmatprep.subr.mxu0 0.0
    %64 = vmatpush1.msra.mxu0 %v35
    %65 = vmatprep.subr.mxu0 0.0
    %66 = vmatpush1.msra.mxu0 %v36
    %67 = vmatprep.subr.mxu0 0.0
    %68 = vmatpush1.msra.mxu0 %v37
    %69 = vmatprep.subr.mxu0 0.0
    %70 = vmatpush1.msra.mxu0 %v38
    %71 = vmatprep.subr.mxu0 0.0
    %72 = vmatpush1.msra.mxu0 %v39
    %73 = vmatprep.subr.mxu0 0.0
    %74 = vmatpush1.msra.mxu0 %v40
    %75 = vmatprep.subr.mxu0 0.0
    %76 = vmatpush1.msra.mxu0 %v41
    %77 = vmatprep.subr.mxu0 0.0
    %78 = vmatpush1.msra.mxu0 %v42
    %79 = vmatprep.subr.mxu0 0.0
    %80 = vmatpush1.msra.mxu0 %v43
    %81 = vmatprep.subr.mxu0 0.0
    %82 = vmatpush1.msra.mxu0 %v44
    %83 = vmatprep.subr.mxu0 0.0
    %84 = vmatpush1.msra.mxu0 %v45
    %85 = vmatprep.subr.mxu0 0.0
    %86 = vmatpush1.msra.mxu0 0.0
    %87 = vmatprep.subr.mxu0 0.0
    %88 = vmatpush1.msra.mxu0 0.0
    %89 = vmatprep.subr.mxu0 0.0
    %90 = vmatpush1.msra.mxu0 0.0
    %91 = vmatprep.subr.mxu0 0.0
    %92 = vmatpush1.msra.mxu0 0.0
    %93 = vmatprep.subr.mxu0 0.0
    %94 = vmatpush1.msra.mxu0 0.0
    %95 = vmatprep.subr.mxu0 0.0
    %96 = vmatpush1.msra.mxu0 0.0
    %97 = vmatprep.subr.mxu0 0.0
    %98 = vmatpush1.msra.mxu0 0.0
    %99 = vmatprep.subr.mxu0 0.0
    %100 = vmatpush1.msra.mxu0 0.0
    %101 = vmatprep.subr.mxu0 0.0
    %102 = vmatpush1.msra.mxu0 0.0
    %103 = vmatprep.subr.mxu0 0.0
    %104 = vmatpush1.msra.mxu0 0.0
    %105 = vmatprep.subr.mxu0 0.0
    %106 = vmatpush1.msra.mxu0 0.0
    %107 = vmatprep.subr.mxu0 0.0
    %108 = vmatpush1.msra.mxu0 0.0
    %109 = vmatprep.subr.mxu0 0.0
    %110 = vmatpush1.msra.mxu0 0.0
    %111 = vmatprep.subr.mxu0 0.0
    %112 = vmatpush1.msra.mxu0 0.0
    %113 = vmatprep.subr.mxu0 0.0
    %114 = vmatpush1.msra.mxu0 0.0
    %115 = vmatprep.subr.mxu0 0.0
    %116 = vmatpush1.msra.mxu0 0.0
    %117 = vmatprep.mubr.f32.mxu0 0.0
    %118 = vmatmul.mubr.f32.gmra.mrb[0].mxu0 %v29
    %v119 = vpop.f32.mrb[0].mxu0
    %v120 = vadd.f32 %v51, %v119
    %v121 = vpop.f32.mrb[0].mxu0
    %122 = vdwg.mxu0
    %123 = vst [vmem:[#allocation5] sm:$0xff] %v120
    // Predicated region
    $region18: #{_forward_impl.1} parent=1 // pred_check
      _
    $region19: #{_forward_impl.1} parent=1 // pred_check_branch
      %125 = sbr.rel (0) target = $region21
    $region20: #{_forward_impl.1} parent=1 // pred_region
      %s127 = ssub.s32 128, 128
      %128 = vsyncadd [#allocation4], %s127
      %s130 = sshll.u32 [#allocation5], 4
      %s131 = int_to_ptr.vmem [resolvable:$true] %s130
      %133 = dma.vmem_to_hbm [thread:$0]  %s131, 128, %s3, [#allocation4]
    $region21: #{_forward_impl.1} parent=1 // pred_fallthru
      _
    // Predicated region
    $region22: #{_forward_impl.1} parent=1 // pred_check
      _
    $region23: #{_forward_impl.1} parent=1 // pred_check_branch
      %135 = sbr.rel (0) target = $region25
    $region24: #{_forward_impl.1} parent=1 // pred_region
      %136 = dma.done [#allocation4], 128
    $region25: #{_forward_impl.1} parent=1 // pred_fallthru
      _
    %137 = vsyncpa [#allocation3], 1
    %138 = vsyncpa [#allocation4], 1

</llo_original>
